<compile_context>
chip_gen: v5e
topology: v5e:2x2
jax: 0.10.0
libtpu: 0.0.40
codegen_flags: <defaults>
</compile_context>

<pallas_src>
import functools

import jax
import jax.numpy as jnp
from jax import lax
from jax.experimental import pallas as pl
from jax.experimental.pallas import tpu as pltpu

_EPS = 1e-6
_MIB = 1024 * 1024
# Below this channel count the lane-dense NSC layout wastes too much of the
# 128-lane vreg width; fall back to the transposed (C, S) layout.
_MIN_NSC_CHANNELS = 32


def _device_kind() -> str:
    try:
        return jax.devices()[0].device_kind.lower()
    except Exception:
        return ""


@functools.lru_cache(maxsize=None)
def _hw_config():
    """Generation-aware knobs (VMEM budgets, bf16 VPU, multi-TensorCore)."""
    kind = _device_kind()
    is_v5e = ("v5 lite" in kind) or ("v5lite" in kind) or ("v5e" in kind)
    multi_tc = "v7" in kind  # v7x: 2 TensorCores per chip, 64 MiB VMEM per TC
    cap = 0
    try:
        cap = int(getattr(pltpu.get_tpu_info(), "vmem_capacity_bytes", 0) or 0)
    except Exception:
        cap = 0
    if cap <= 0:
        cap = 64 * _MIB if (multi_tc or not kind) else 128 * _MIB
    big_vmem = cap >= 100 * _MIB
    return {
        # v5e VPU has no native bf16; unknown devices get the always-safe f32 path.
        "bf16_vpu": bool(kind) and not is_v5e,
        "multi_tc": multi_tc,
        "fast_budget": (80 if big_vmem else 36) * _MIB,
        "fast_limit": (112 if big_vmem else 48) * _MIB,
        "stream_limit": (64 if big_vmem else 48) * _MIB,
        "tile_bytes": (8 if big_vmem else 4) * _MIB,
        "chunk_bytes": 2 * _MIB,
    }


def _pick_divisor_tile(total, per_row_bytes, max_bytes, mult):
    """Largest t with mult | t, t | total, t * per_row_bytes <= max_bytes (else None)."""
    if total % mult != 0:
        return None
    cap = max(mult, max_bytes // max(per_row_bytes, 1))
    best = None
    d = 1
    while d * d <= total:
        if total % d == 0:
            for t in (d, total // d):
                if t % mult == 0 and t <= cap and (best is None or t > best):
                    best = t
        d += 1
    return best


# ---------------------------------------------------------------------------
# Lane-dense NHWC path: x viewed as (N, S, C) with C on the lane axis.
# ---------------------------------------------------------------------------
def _nsc_slab_kernel(x_ref, gamma_ref, beta_ref, o_ref, *, inv_c, bf16_epilogue, chunk):
    s, c = x_ref.shape
    if chunk >= s:
        xf = x_ref[...].astype(jnp.float32)                       # (S, C)
        ss = jnp.sum(xf * xf, axis=0, keepdims=True)              # (1, C)
    else:
        # Chunked accumulation: never materializes a full-slab f32 temporary
        # (lets bigger slabs stay on the fast path, esp. on v7x's 64 MiB VMEM).
        def body(i, acc):
            start = pl.multiple_of(i * chunk, chunk)
            xs = x_ref[pl.ds(start, chunk), :].astype(jnp.float32)
            return acc + jnp.sum(xs * xs, axis=0, keepdims=True)

        ss = lax.fori_loop(0, s // chunk, body, jnp.zeros((1, c), jnp.float32))

    gx = jnp.sqrt(ss)                                             # (1, C)
    mu = jnp.sum(gx, axis=-1, keepdims=True) * inv_c              # (1, 1)
    # Exact reciprocal: approx=True (~1e-4 rel err) breaks the 1e-5 check and
    # this is one tiny vector per grid step in an HBM-bound kernel.
    nx = gx * pl.reciprocal(mu + _EPS, approx=False)              # (1, C)
    scale = gamma_ref[...] * nx + 1.0                             # (1, C) f32
    beta = beta_ref[...]                                          # (1, C) f32
    if bf16_epilogue:
        scale = scale.astype(o_ref.dtype)
        beta = beta.astype(o_ref.dtype)

    def apply(xs):
        if bf16_epilogue:
            return xs * scale + beta
        return xs.astype(jnp.float32) * scale + beta

    if chunk >= s:
        o_ref[...] = apply(x_ref[...]).astype(o_ref.dtype)
    else:
        @pl.loop(0, s // chunk)
        def _(i):
            start = pl.multiple_of(i * chunk, chunk)
            o_ref[pl.ds(start, chunk), :] = (
                apply(x_ref[pl.ds(start, chunk), :]).astype(o_ref.dtype))


def _nsc_sumsq_kernel(x_ref, ss_ref):
    """Pass 1: accumulate per-channel sum of squares across spatial tiles (f32)."""
    @pl.when(pl.program_id(1) == 0)
    def _():
        ss_ref[...] = jnp.zeros_like(ss_ref)

    xf = x_ref[...].astype(jnp.float32)                           # (tile_s, C)
    ss_ref[...] += jnp.sum(xf * xf, axis=0, keepdims=True)        # (1, C)


def _nsc_apply_kernel(x_ref, ss_ref, gamma_ref, beta_ref, o_ref, *, inv_c, bf16_epilogue):
    """Pass 2: recompute the tiny scale from raw sumsq, then elementwise apply."""
    gx = jnp.sqrt(ss_ref[...])                                    # (1, C)
    mu = jnp.sum(gx, axis=-1, keepdims=True) * inv_c
    scale = gamma_ref[...] * (gx * pl.reciprocal(mu + _EPS, approx=False)) + 1.0
    beta = beta_ref[...]
    x = x_ref[...]                                                # (tile_s, C)
    if bf16_epilogue:
        o_ref[...] = (x * scale.astype(x.dtype) + beta.astype(x.dtype)).astype(o_ref.dtype)
    else:
        o_ref[...] = (x.astype(jnp.float32) * scale + beta).astype(o_ref.dtype)


# ---------------------------------------------------------------------------
# Tiny-C path: x transposed to (N, C, S) so the big spatial axis is lane-dense.
# ---------------------------------------------------------------------------
def _ncs_slab_kernel(x_ref, gamma_ref, beta_ref, o_ref, *, inv_c, bf16_epilogue):
    x = x_ref[...]                                                # (C, S)
    xf = x.astype(jnp.float32)
    gx = jnp.sqrt(jnp.sum(xf * xf, axis=-1, keepdims=True))       # (C, 1)
    mu = jnp.sum(gx, axis=0, keepdims=True) * inv_c               # (1, 1)
    scale = gamma_ref[...] * (gx * pl.reciprocal(mu + _EPS, approx=False)) + 1.0
    beta = beta_ref[...]
    if bf16_epilogue:
        o_ref[...] = (x * scale.astype(x.dtype) + beta.astype(x.dtype)).astype(o_ref.dtype)
    else:
        o_ref[...] = (xf * scale + beta).astype(o_ref.dtype)


def _ncs_sumsq_kernel(x_ref, ss_ref):
    @pl.when(pl.program_id(1) == 0)
    def _():
        ss_ref[...] = jnp.zeros_like(ss_ref)

    xf = x_ref[...].astype(jnp.float32)                           # (C, tile_s)
    ss_ref[...] += jnp.sum(xf * xf, axis=-1, keepdims=True)       # (C, 1)


def _ncs_apply_kernel(x_ref, ss_ref, gamma_ref, beta_ref, o_ref, *, inv_c, bf16_epilogue):
    gx = jnp.sqrt(ss_ref[...])                                    # (C, 1)
    mu = jnp.sum(gx, axis=0, keepdims=True) * inv_c
    scale = gamma_ref[...] * (gx * pl.reciprocal(mu + _EPS, approx=False)) + 1.0
    beta = beta_ref[...]
    x = x_ref[...]                                                # (C, tile_s)
    if bf16_epilogue:
        o_ref[...] = (x * scale.astype(x.dtype) + beta.astype(x.dtype)).astype(o_ref.dtype)
    else:
        o_ref[...] = (x.astype(jnp.float32) * scale + beta).astype(o_ref.dtype)


# ---------------------------------------------------------------------------
# Wrappers.
# ---------------------------------------------------------------------------
def _grn_nsc(x, gamma, beta, *, cfg, force_two_pass, chunk_bytes, tile_bytes):
    """GRN on (N, S, C) with C on lanes (native NHWC, no transposes)."""
    N, S, C = x.shape
    out_dtype = x.dtype
    itemsize = jnp.dtype(x.dtype).itemsize
    bf16_epilogue = (x.dtype == jnp.bfloat16) and cfg["bf16_vpu"]
    sub_mult = 8 * max(1, 4 // itemsize)     # sub-32-bit dtypes pack along sublanes

    gamma2 = jnp.reshape(gamma, (1, C)).astype(jnp.float32)
    beta2 = jnp.reshape(beta, (1, C)).astype(jnp.float32)
    inv_c = 1.0 / C

    chunk_bytes = cfg["chunk_bytes"] if chunk_bytes is None else chunk_bytes
    tile_bytes = cfg["tile_bytes"] if tile_bytes is None else tile_bytes

    chunk = _pick_divisor_tile(S, C * 4, chunk_bytes, sub_mult) or S
    tile_s = _pick_divisor_tile(S, C * itemsize, tile_bytes, sub_mult)

    slab_bytes = S * C * itemsize
    # 2x double-buffered input + output slabs, plus the f32 working copies the
    # (possibly chunked) sum-of-squares / epilogue materialize.
    fast_path_bytes = 4 * slab_bytes + 3 * chunk * C * 4

    use_two_pass = (
        force_two_pass
        or fast_path_bytes > cfg["fast_budget"]
        # On 2-TC parts (v7x) a second grid axis lets both cores share one big
        # slab; on 1-TC parts single-pass (1R + 1W) always wins.
        or (cfg["multi_tc"] and N < 2 and tile_s is not None and S // tile_s >= 2)
    )

    if not use_two_pass:
        kernel = functools.partial(_nsc_slab_kernel, inv_c=inv_c,
                                   bf16_epilogue=bf16_epilogue, chunk=chunk)
        return pl.pallas_call(
            kernel,
            out_shape=jax.ShapeDtypeStruct((N, S, C), out_dtype),
            grid_spec=pltpu.PrefetchScalarGridSpec(
                num_scalar_prefetch=0,
                grid=(N,),
                in_specs=[
                    pl.BlockSpec((pl.Squeezed(), S, C), lambda n: (n, 0, 0)),
                    # constant index_map -> resident across the grid
                    pl.BlockSpec((1, C), lambda n: (0, 0)),
                    pl.BlockSpec((1, C), lambda n: (0, 0)),
                ],
                out_specs=pl.BlockSpec((pl.Squeezed(), S, C), lambda n: (n, 0, 0)),
            ),
            compiler_params=pltpu.CompilerParams(
                dimension_semantics=("parallel",),
                vmem_limit_bytes=cfg["fast_limit"],
            ),
        )(x, gamma2, beta2)

    # ---- streaming two-pass ----
    S_p, xp = S, x
    if tile_s is None:
        # Pad the spatial axis so a legal sublane tile exists (zeros are inert
        # in the sum of squares; padded rows are sliced off after the apply).
        S_p = ((S + sub_mult - 1) // sub_mult) * sub_mult
        xp = jnp.pad(x, ((0, 0), (0, S_p - S), (0, 0)))
        tile_s = _pick_divisor_tile(S_p, C * itemsize, tile_bytes, sub_mult)
    n_tiles = S_p // tile_s

    ss = pl.pallas_call(
        _nsc_sumsq_kernel,
        out_shape=jax.ShapeDtypeStruct((N, 1, C), jnp.float32),
        grid_spec=pltpu.PrefetchScalarGridSpec(
            num_scalar_prefetch=0,
            grid=(N, n_tiles),
            in_specs=[pl.BlockSpec((pl.Squeezed(), tile_s, C), lambda n, t: (n, t, 0))],
            out_specs=pl.BlockSpec((pl.Squeezed(), 1, C), lambda n, t: (n, 0, 0)),
        ),
        compiler_params=pltpu.CompilerParams(
            dimension_semantics=("parallel", "arbitrary"),
            vmem_limit_bytes=cfg["stream_limit"],
        ),
    )(xp)

    kernel = functools.partial(_nsc_apply_kernel, inv_c=inv_c, bf16_epilogue=bf16_epilogue)
    out = pl.pallas_call(
        kernel,
        out_shape=jax.ShapeDtypeStruct((N, S_p, C), out_dtype),
        grid_spec=pltpu.PrefetchScalarGridSpec(
            num_scalar_prefetch=0,
            grid=(N, n_tiles),
            in_specs=[
                pl.BlockSpec((pl.Squeezed(), tile_s, C), lambda n, t: (n, t, 0)),
                pl.BlockSpec((pl.Squeezed(), 1, C), lambda n, t: (n, 0, 0)),
                pl.BlockSpec((1, C), lambda n, t: (0, 0)),
                pl.BlockSpec((1, C), lambda n, t: (0, 0)),
            ],
            out_specs=pl.BlockSpec((pl.Squeezed(), tile_s, C), lambda n, t: (n, t, 0)),
        ),
        compiler_params=pltpu.CompilerParams(
            dimension_semantics=("parallel", "parallel"),
            vmem_limit_bytes=cfg["stream_limit"],
        ),
    )(xp, ss, gamma2, beta2)
    return out if S_p == S else out[:, :S, :]


def _grn_ncs(x, gamma, beta, *, cfg, force_two_pass, tile_bytes):
    """GRN on (N, C, S) with S = H*W on the lane axis (tiny-C fallback)."""
    N, C, S = x.shape
    out_dtype = x.dtype
    itemsize = jnp.dtype(x.dtype).itemsize
    bf16_epilogue = (x.dtype == jnp.bfloat16) and cfg["bf16_vpu"]

    gamma2 = jnp.reshape(gamma, (C, 1)).astype(jnp.float32)
    beta2 = jnp.reshape(beta, (C, 1)).astype(jnp.float32)
    inv_c = 1.0 / C

    tile_bytes = cfg["tile_bytes"] if tile_bytes is None else tile_bytes
    tile_s = _pick_divisor_tile(S, C * itemsize, tile_bytes, 128)   # lane axis tile

    slab_bytes = S * C * itemsize
    fast_path_bytes = 4 * slab_bytes + 3 * S * C * 4

    use_two_pass = (
        force_two_pass
        or fast_path_bytes > cfg["fast_budget"]
        or (cfg["multi_tc"] and N < 2 and tile_s is not None and S // tile_s >= 2)
    )

    if not use_two_pass:
        kernel = functools.partial(_ncs_slab_kernel, inv_c=inv_c, bf16_epilogue=bf16_epilogue)
        return pl.pallas_call(
            kernel,
            out_shape=jax.ShapeDtypeStruct((N, C, S), out_dtype),
            grid_spec=pltpu.PrefetchScalarGridSpec(
                num_scalar_prefetch=0,
                grid=(N,),
                in_specs=[
                    pl.BlockSpec((pl.Squeezed(), C, S), lambda n: (n, 0, 0)),
                    pl.BlockSpec((C, 1), lambda n: (0, 0)),
                    pl.BlockSpec((C, 1), lambda n: (0, 0)),
                ],
                out_specs=pl.BlockSpec((pl.Squeezed(), C, S), lambda n: (n, 0, 0)),
            ),
            compiler_params=pltpu.CompilerParams(
                dimension_semantics=("parallel",),
                vmem_limit_bytes=cfg["fast_limit"],
            ),
        )(x, gamma2, beta2)

    S_p, xp = S, x
    if tile_s is None:
        S_p = ((S + 127) // 128) * 128
        xp = jnp.pad(x, ((0, 0), (0, 0), (0, S_p - S)))
        tile_s = _pick_divisor_tile(S_p, C * itemsize, tile_bytes, 128)
    n_tiles = S_p // tile_s

    ss = pl.pallas_call(
        _ncs_sumsq_kernel,
        out_shape=jax.ShapeDtypeStruct((N, C, 1), jnp.float32),
        grid_spec=pltpu.PrefetchScalarGridSpec(
            num_scalar_prefetch=0,
            grid=(N, n_tiles),
            in_specs=[pl.BlockSpec((pl.Squeezed(), C, tile_s), lambda n, t: (n, 0, t))],
            out_specs=pl.BlockSpec((pl.Squeezed(), C, 1), lambda n, t: (n, 0, 0)),
        ),
        compiler_params=pltpu.CompilerParams(
            dimension_semantics=("parallel", "arbitrary"),
            vmem_limit_bytes=cfg["stream_limit"],
        ),
    )(xp)

    kernel = functools.partial(_ncs_apply_kernel, inv_c=inv_c, bf16_epilogue=bf16_epilogue)
    out = pl.pallas_call(
        kernel,
        out_shape=jax.ShapeDtypeStruct((N, C, S_p), out_dtype),
        grid_spec=pltpu.PrefetchScalarGridSpec(
            num_scalar_prefetch=0,
            grid=(N, n_tiles),
            in_specs=[
                pl.BlockSpec((pl.Squeezed(), C, tile_s), lambda n, t: (n, 0, t)),
                pl.BlockSpec((pl.Squeezed(), C, 1), lambda n, t: (n, 0, 0)),
                pl.BlockSpec((C, 1), lambda n, t: (0, 0)),
                pl.BlockSpec((C, 1), lambda n, t: (0, 0)),
            ],
            out_specs=pl.BlockSpec((pl.Squeezed(), C, tile_s), lambda n, t: (n, 0, t)),
        ),
        compiler_params=pltpu.CompilerParams(
            dimension_semantics=("parallel", "parallel"),
            vmem_limit_bytes=cfg["stream_limit"],
        ),
    )(xp, ss, gamma2, beta2)
    return out if S_p == S else out[:, :, :S]


def grn(x, gamma, beta, *, force_two_pass=False, sumsq_chunk_bytes=None,
        stream_tile_bytes=None):
    """GRN on NHWC input (N, H, W, C), matching the PyTorch module forward."""
    N, H, W, C = x.shape
    S = H * W
    cfg = _hw_config()
    if C >= _MIN_NSC_CHANNELS:
        # Lane-friendly C (every real ConvNeXt-V2 GRN): stay in NHWC, zero transposes.
        out = _grn_nsc(x.reshape(N, S, C), gamma, beta, cfg=cfg,
                       force_two_pass=force_two_pass,
                       chunk_bytes=sumsq_chunk_bytes, tile_bytes=stream_tile_bytes)
        return out.reshape(N, H, W, C)
    # Tiny C: lane-dense spatial layout via explicit transposes.
    # TODO(synk): fold this transpose into the kernel (XLU) if tiny-C GRNs ever matter.
    x_ncs = jnp.transpose(x, (0, 3, 1, 2)).reshape(N, C, S)
    out = _grn_ncs(x_ncs, gamma, beta, cfg=cfg, force_two_pass=force_two_pass,
                   tile_bytes=stream_tile_bytes)
    return jnp.transpose(out.reshape(N, C, H, W), (0, 2, 3, 1))


def grn_ref(x, gamma, beta):
    """Pure-JAX reference mirroring the PyTorch forward exactly."""
    g = jnp.reshape(gamma, (1, 1, 1, -1))
    b = jnp.reshape(beta, (1, 1, 1, -1))
    xf = x.astype(jnp.float32)
    gx = jnp.sqrt(jnp.sum(xf * xf, axis=(1, 2), keepdims=True))
    nx = gx / (jnp.mean(gx, axis=-1, keepdims=True) + 1e-6)
    return (g * (xf * nx) + b + xf).astype(x.dtype)


if __name__ == "__main__":
    root = jax.random.PRNGKey(0)
    kx, kg, kb, kx2, kg2, kb2 = jax.random.split(root, 6)

    # --- tiny-C case (exercises the transposed (C, S) fallback path) ---
    N, H, W, C = 2, 16, 16, 4
    x = jax.random.normal(kx, (N, H, W, C), dtype=jnp.float32)
    # nn.Parameter(torch.zeros(...)) in the module; use non-zero values so the
    # full compute path is exercised.
    gamma = 0.1 * jax.random.normal(kg, (C,), dtype=jnp.float32)
    beta = 0.1 * jax.random.normal(kb, (C,), dtype=jnp.float32)
    ref = grn_ref(x, gamma, beta)

    out = grn(x, gamma, beta)
    jax.block_until_ready(out)
    assert jnp.allclose(out, ref, atol=1e-5, rtol=1e-5), "tiny-C fast path mismatch"

    out2p = grn(x, gamma, beta, force_two_pass=True)
    jax.block_until_ready(out2p)
    assert jnp.allclose(out2p, ref, atol=1e-5, rtol=1e-5), "tiny-C two-pass mismatch"

    # --- lane-friendly C (ConvNeXt-style): native NHWC layout, no transposes ---
    N2, H2, W2, C2 = 2, 4, 4, 128
    x2 = jax.random.normal(kx2, (N2, H2, W2, C2), dtype=jnp.float32)
    g2 = 0.1 * jax.random.normal(kg2, (C2,), dtype=jnp.float32)
    b2 = 0.1 * jax.random.normal(kb2, (C2,), dtype=jnp.float32)
    ref2 = grn_ref(x2, g2, b2)

    o_fast = grn(x2, g2, b2)
    jax.block_until_ready(o_fast)
    assert jnp.allclose(o_fast, ref2, atol=1e-5, rtol=1e-5), "NSC fast path mismatch"

    # Chunked sum-of-squares / epilogue inside the slab kernel (v7x low-VMEM mode).
    o_chunk = grn(x2, g2, b2, sumsq_chunk_bytes=8 * C2 * 4)
    jax.block_until_ready(o_chunk)
    assert jnp.allclose(o_chunk, ref2, atol=1e-5, rtol=1e-5), "NSC chunked path mismatch"

    # Streaming two-pass with multiple spatial tiles.
    o_stream = grn(x2, g2, b2, force_two_pass=True, stream_tile_bytes=8 * C2 * 4)
    jax.block_until_ready(o_stream)
    assert jnp.allclose(o_stream, ref2, atol=1e-5, rtol=1e-5), "NSC streaming path mismatch"

    # bf16 exercises the native-bf16 epilogue on v6e/v7x (f32 sum-of-squares kept).
    xb = x.astype(jnp.bfloat16)
    outb = grn(xb, gamma, beta)
    jax.block_until_ready(outb)
    refb = grn_ref(xb, gamma, beta)
    assert jnp.allclose(outb.astype(jnp.float32), refb.astype(jnp.float32),
                        atol=1e-1, rtol=5e-2), "tiny-C bf16 mismatch"

    x2b = x2.astype(jnp.bfloat16)
    out2b = grn(x2b, g2, b2)
    jax.block_until_ready(out2b)
    ref2b = grn_ref(x2b, g2, b2)
    assert jnp.allclose(out2b.astype(jnp.float32), ref2b.astype(jnp.float32),
                        atol=1e-1, rtol=5e-2), "NSC bf16 mismatch"

    print("KERNEL_OK")
</pallas_src>

<mosaic_0001>
module attributes {stable_mosaic.version = 11 : i64} {
  func.func @_ncs_slab_kernel(%arg0: i32, %arg1: memref<1x4x256xf32, #tpu.memory_space<vmem>>, %arg2: memref<4x1xf32, #tpu.memory_space<vmem>>, %arg3: memref<4x1xf32, #tpu.memory_space<vmem>>, %arg4: memref<1x4x256xf32, #tpu.memory_space<vmem>>) attributes {dimension_semantics = [#tpu.dimension_semantics<parallel>], iteration_bounds = array<i64: 2>, scalar_prefetch = 0 : i64, scratch_operands = 0 : i64, tpu.core_type = #tpu.core_type<tc>, window_params = [{transform_indices = @transform_0, window_bounds = array<i64: 1, 4, 256>}, {pipeline_mode = #tpu.pipeline_mode<synchronous>, transform_indices = @transform_1, window_bounds = array<i64: 4, 1>}, {pipeline_mode = #tpu.pipeline_mode<synchronous>, transform_indices = @transform_2, window_bounds = array<i64: 4, 1>}, {transform_indices = @transform_3, window_bounds = array<i64: 1, 4, 256>}]} {
    %c0 = arith.constant 0 : index
    %c0_0 = arith.constant 0 : index
    %c0_1 = arith.constant 0 : index
    %0 = vector.load %arg1[%c0, %c0_0, %c0_1] : memref<1x4x256xf32, #tpu.memory_space<vmem>>, vector<1x4x256xf32>
    %1 = vector.shape_cast %0 : vector<1x4x256xf32> to vector<4x256xf32>
    %2 = arith.mulf %1, %1 : vector<4x256xf32>
    %cst = arith.constant dense<0.000000e+00> : vector<4xf32>
    %3 = vector.multi_reduction <add>, %2, %cst [1] : vector<4x256xf32> to vector<4xf32>
    %4 = vector.shape_cast %3 : vector<4xf32> to vector<4x1xf32>
    %5 = math.sqrt %4 : vector<4x1xf32>
    %cst_2 = arith.constant dense<0.000000e+00> : vector<1xf32>
    %6 = vector.multi_reduction <add>, %5, %cst_2 [0] : vector<4x1xf32> to vector<1xf32>
    %7 = vector.shape_cast %6 : vector<1xf32> to vector<1x1xf32>
    %cst_3 = arith.constant 2.500000e-01 : f32
    %8 = vector.broadcast %cst_3 : f32 to vector<1x1xf32>
    %9 = arith.mulf %7, %8 : vector<1x1xf32>
    %c0_4 = arith.constant 0 : index
    %c0_5 = arith.constant 0 : index
    %10 = vector.load %arg2[%c0_4, %c0_5] : memref<4x1xf32, #tpu.memory_space<vmem>>, vector<4x1xf32>
    %cst_6 = arith.constant 9.99999997E-7 : f32
    %11 = vector.broadcast %cst_6 : f32 to vector<1x1xf32>
    %12 = arith.addf %9, %11 : vector<1x1xf32>
    %13 = tpu.reciprocal %12 : vector<1x1xf32> -> vector<1x1xf32>
    %14 = vector.broadcast %13 : vector<1x1xf32> to vector<4x1xf32>
    %15 = arith.mulf %5, %14 : vector<4x1xf32>
    %16 = arith.mulf %10, %15 : vector<4x1xf32>
    %cst_7 = arith.constant 1.000000e+00 : f32
    %17 = vector.broadcast %cst_7 : f32 to vector<4x1xf32>
    %18 = arith.addf %16, %17 : vector<4x1xf32>
    %c0_8 = arith.constant 0 : index
    %c0_9 = arith.constant 0 : index
    %19 = vector.load %arg3[%c0_8, %c0_9] : memref<4x1xf32, #tpu.memory_space<vmem>>, vector<4x1xf32>
    %20 = vector.broadcast %18 : vector<4x1xf32> to vector<4x256xf32>
    %21 = arith.mulf %1, %20 : vector<4x256xf32>
    %22 = vector.broadcast %19 : vector<4x1xf32> to vector<4x256xf32>
    %23 = arith.addf %21, %22 : vector<4x256xf32>
    %c0_10 = arith.constant 0 : index
    %c0_11 = arith.constant 0 : index
    %c0_12 = arith.constant 0 : index
    %24 = vector.load %arg4[%c0_10, %c0_11, %c0_12] : memref<1x4x256xf32, #tpu.memory_space<vmem>>, vector<1x4x256xf32>
    %25 = vector.shape_cast %24 : vector<1x4x256xf32> to vector<4x256xf32>
    %26 = vector.shape_cast %23 : vector<4x256xf32> to vector<1x4x256xf32>
    tpu.vector_store %arg4[%c0_10, %c0_11, %c0_12], %26 {strides = array<i32>} : memref<1x4x256xf32, #tpu.memory_space<vmem>>, vector<1x4x256xf32>,
    return
  }
  func.func @transform_0(%arg0: i32) -> (i32, i32, i32) {
    %c0_i32 = arith.constant 0 : i32
    %c0_i32_0 = arith.constant 0 : i32
    %c0_i32_1 = arith.constant 0 : i32
    return %arg0, %c0_i32, %c0_i32_0 : i32, i32, i32
  }
  func.func @transform_1(%arg0: i32) -> (i32, i32) {
    %c0_i32 = arith.constant 0 : i32
    %c0_i32_0 = arith.constant 0 : i32
    %c0_i32_1 = arith.constant 0 : i32
    return %c0_i32, %c0_i32_0 : i32, i32
  }
  func.func @transform_2(%arg0: i32) -> (i32, i32) {
    %c0_i32 = arith.constant 0 : i32
    %c0_i32_0 = arith.constant 0 : i32
    %c0_i32_1 = arith.constant 0 : i32
    return %c0_i32, %c0_i32_0 : i32, i32
  }
  func.func @transform_3(%arg0: i32) -> (i32, i32, i32) {
    %c0_i32 = arith.constant 0 : i32
    %c0_i32_0 = arith.constant 0 : i32
    %c0_i32_1 = arith.constant 0 : i32
    return %arg0, %c0_i32, %c0_i32_0 : i32, i32, i32
  }
}

</mosaic_0001>

<llo_original>
// kernel: tpu_custom_call.1
$region0: #{tpu_custom_call.1}
  #allocation0 [shape = 'u32[]', space=smem, size = 0x4, offset = 0x4, fixed_abs, tag = 'smem constant byte address 0x4 - core index']
  #allocation1 [shape = 'u32[72,128]{1,0:T(1,128)}', space=vmem, size = 0x9000, scoped, tag = 'internal scratch']
  %s0 = inlined_call_operand.hbm [shape: f32[2,4,256], index: 0, kind: input, shape index: {}]
  %s1 = inlined_call_operand.vmem [shape: f32[4,1], index: 1, kind: input, shape index: {}]
  %s2 = inlined_call_operand.vmem [shape: f32[4,1], index: 2, kind: input, shape index: {}]
  %s3 = inlined_call_operand.hbm [shape: f32[2,4,256], index: 3, kind: output, shape index: {}]
  %s4 = sld [smem:[#allocation0]]
  $region49: #{tpu_custom_call.1} parent=0
    _
  %s6 = ssub.s32 1, %s4
  %s7 = scalar_select 0, %s6, %s4
  $region1: #{tpu_custom_call.1} parent=0
    #allocation2 [shape = 'u8[8192]{0}', space=vmem, size = 0x2000, scoped, tag = 'input window, operand 0']
    #allocation3 [shape = 's32[2]{0}', space=sflag, size = 0x8, scoped, tag = 'scoped memory for tpu_custom_call.1']
    #allocation4 [shape = 's32[2]{0}', space=sflag, size = 0x8, scoped, tag = 'scoped memory for tpu_custom_call.1']
    #allocation5 [shape = 'u8[8192]{0}', space=vmem, size = 0x2000, scoped, tag = 'output window, operand 0']
    %8 = vsyncpa [#allocation3], 0
    %s9 = scalar_lea.sflag [#allocation3], 1
    %10 = vsyncpa %s9, 0
    %11 = vsyncpa [#allocation4], 0
    %s12 = scalar_lea.sflag [#allocation4], 1
    %13 = vsyncpa %s12, 0
    loop: start=0, step=1, limit=4
    $region2: #{tpu_custom_call.1} parent=1 // loop_pre_header
      _
    $region3: #{tpu_custom_call.1} parent=1 // loop_header
      %s15 = sphi 0, %s19
      %p16 = scmp.ge.s32.totalorder %s15, 4
      %s25 = sphi 0, %s27
      %s28 = sphi 0, %s25
      %s29 = sphi 0, %s28
      %s45 = sphi 0, %s29
      %s49 = sphi 0, %s49
      %s51 = sphi 0, %s49
      %s52 = sphi 0, %s51
      %s66 = sphi 0, %s52
      %s70 = sphi 0, %s70
      %s72 = sphi 0, %s70
      %s73 = sphi 0, %s72
      %s87 = sphi 0, %s73
      %s93 = sphi 0, %s95
      %s96 = sphi 0, %s93
      %s97 = sphi 0, %s96
      %s113 = sphi 0, %s97
    $region4: #{tpu_custom_call.1} parent=1 // loop_header_branch
      %18 = sbr.rel (%p16) target = $region8
    $region5: #{tpu_custom_call.1} parent=1 // loop_body
      %s20 = ssub.s32 %s15, 1
      %s21 = ssub.s32 %s15, 2
      %s22 = sadd.s32 %s15, 1
      %s23 = ssub.s32 %s15, %s22
      %p24 = scmp.eq.s32.totalorder %s23, 0
      %s26 = sadd.s32 %s25, 1
      %s27 = scalar_select %p24, %s25, %s26
      %p30 = pneg %p24
      %p31 = scmp.eq.s32.totalorder %s15, 1
      %p32 = por %p30, %p31
      %p33 = scmp.ne.s32.totalorder %s25, %s28
      %p34 = scmp.eq.s32.totalorder %s15, 0
      %p35 = por %p33, %p34
      %p36 = scmp.ne.s32.totalorder %s25, %s28
      %p37 = scmp.eq.s32.totalorder %s20, 1
      %p38 = por %p36, %p37
      %p39 = scmp.ne.s32.totalorder %s28, %s29
      %p40 = scmp.eq.s32.totalorder %s20, 0
      %p41 = por %p39, %p40
      %p42 = scmp.ne.s32.totalorder %s28, %s29
      %p43 = scmp.eq.s32.totalorder %s21, 1
      %p44 = por %p42, %p43
      %p46 = scmp.ne.s32.totalorder %s29, %s45
      %p47 = scmp.eq.s32.totalorder %s21, 0
      %p48 = por %p46, %p47
      %s50 = sadd.s32 %s49, 1
      %p53 = scmp.eq.s32.totalorder %s15, 1
      %p54 = scmp.ne.s32.totalorder %s49, %s51
      %p55 = scmp.eq.s32.totalorder %s15, 0
      %p56 = por %p54, %p55
      %p57 = scmp.ne.s32.totalorder %s49, %s51
      %p58 = scmp.eq.s32.totalorder %s20, 1
      %p59 = por %p57, %p58
      %p60 = scmp.ne.s32.totalorder %s51, %s52
      %p61 = scmp.eq.s32.totalorder %s20, 0
      %p62 = por %p60, %p61
      %p63 = scmp.ne.s32.totalorder %s51, %s52
      %p64 = scmp.eq.s32.totalorder %s21, 1
      %p65 = por %p63, %p64
      %p67 = scmp.ne.s32.totalorder %s52, %s66
      %p68 = scmp.eq.s32.totalorder %s21, 0
      %p69 = por %p67, %p68
      %s71 = sadd.s32 %s70, 1
      %p74 = scmp.eq.s32.totalorder %s15, 1
      %p75 = scmp.ne.s32.totalorder %s70, %s72
      %p76 = scmp.eq.s32.totalorder %s15, 0
      %p77 = por %p75, %p76
      %p78 = scmp.ne.s32.totalorder %s70, %s72
      %p79 = scmp.eq.s32.totalorder %s20, 1
      %p80 = por %p78, %p79
      %p81 = scmp.ne.s32.totalorder %s72, %s73
      %p82 = scmp.eq.s32.totalorder %s20, 0
      %p83 = por %p81, %p82
      %p84 = scmp.ne.s32.totalorder %s72, %s73
      %p85 = scmp.eq.s32.totalorder %s21, 1
      %p86 = por %p84, %p85
      %p88 = scmp.ne.s32.totalorder %s73, %s87
      %p89 = scmp.eq.s32.totalorder %s21, 0
      %p90 = por %p88, %p89
      %s91 = ssub.s32 %s15, %s22
      %p92 = scmp.eq.s32.totalorder %s91, 0
      %s94 = sadd.s32 %s93, 1
      %s95 = scalar_select %p92, %s93, %s94
      %p98 = pneg %p92
      %p99 = scmp.eq.s32.totalorder %s15, 1
      %p100 = por %p98, %p99
      %p101 = scmp.ne.s32.totalorder %s93, %s96
      %p102 = scmp.eq.s32.totalorder %s15, 0
      %p103 = por %p101, %p102
      %p104 = scmp.ne.s32.totalorder %s93, %s96
      %p105 = scmp.eq.s32.totalorder %s20, 1
      %p106 = por %p104, %p105
      %p107 = scmp.ne.s32.totalorder %s96, %s97
      %p108 = scmp.eq.s32.totalorder %s20, 0
      %p109 = por %p107, %p108
      %p110 = scmp.ne.s32.totalorder %s96, %s97
      %p111 = scmp.eq.s32.totalorder %s21, 1
      %p112 = por %p110, %p111
      %p114 = scmp.ne.s32.totalorder %s97, %s113
      %p115 = scmp.eq.s32.totalorder %s21, 0
      %p116 = por %p114, %p115
      %p117 = scmp.le.s32.totalorder 1, %s15
      %p118 = scmp.lt.s32.totalorder %s15, 3
      %p119 = pnand %p117, %p118
      %p120 = pneg %p119
      // Predicated region
      $region9: #{tpu_custom_call.1} parent=5 // pred_check
        _
      $region10: #{tpu_custom_call.1} parent=5 // pred_check_branch
        %122 = sbr.rel (%p119) target = $region12
      $region11: #{tpu_custom_call.1} parent=5 // pred_region
        %s123 = ssub.s32 %s15, 1
        // Predicated region
        $region13: #{tpu_custom_call.1} parent=11 // pred_check
          %p124 = pneg %p62
        $region14: #{tpu_custom_call.1} parent=11 // pred_check_branch
          %126 = sbr.rel (%p124) target = $region16
        $region15: #{tpu_custom_call.1} parent=11 // pred_region
          _
        $region16: #{tpu_custom_call.1} parent=11 // pred_fallthru
          _
        // Predicated region
        $region17: #{tpu_custom_call.1} parent=11 // pred_check
          %p127 = pneg %p83
        $region18: #{tpu_custom_call.1} parent=11 // pred_check_branch
          %129 = sbr.rel (%p127) target = $region20
        $region19: #{tpu_custom_call.1} parent=11 // pred_region
          _
        $region20: #{tpu_custom_call.1} parent=11 // pred_fallthru
          _
      $region12: #{tpu_custom_call.1} parent=5 // pred_fallthru
        _
      %p130 = scmp.lt.s32.totalorder %s15, 2
      // Predicated region
      $region21: #{tpu_custom_call.1} parent=5 // pred_check
        %p131 = pneg %p130
      $region22: #{tpu_custom_call.1} parent=5 // pred_check_branch
        %133 = sbr.rel (%p131) target = $region24
      $region23: #{tpu_custom_call.1} parent=5 // pred_region
        // Predicated region
        $region25: #{tpu_custom_call.1} parent=23 // pred_check
          %p134 = pneg %p35
        $region26: #{tpu_custom_call.1} parent=23 // pred_check_branch
          %136 = sbr.rel (%p134) target = $region28
        $region27: #{tpu_custom_call.1} parent=23 // pred_region
          %s137 = sand.u32 %s25, 1
          %s138 = scalar_lea.sflag [#allocation3], %s137
          %s139 = sand.u32 %s25, 1
          %s140 = smul.addr %s139, 8
          %s141 = scalar_lea.vmem [#allocation2], %s140
          %143 = vsyncadd %s138, 0
          %s144 = smul.addr %s15, 2
          %s145 = smul.addr %s144, 4
          %s146 = scalar_lea.hbm %s0, %s145
          %s148 = sshll.u32 %s146, 4
          %s149 = int_to_ptr.hbm [resolvable:$true] %s148
          %s150 = sshll.u32 %s141, 4
          %s151 = int_to_ptr.vmem [resolvable:$true] %s150
          %153 = dma.hbm_to_vmem [thread:$0]  %s149, 128, %s151, %s138
        $region28: #{tpu_custom_call.1} parent=23 // pred_fallthru
          _
      $region24: #{tpu_custom_call.1} parent=5 // pred_fallthru
        _
      %p154 = scmp.le.s32.totalorder 1, %s15
      %p155 = scmp.lt.s32.totalorder %s15, 3
      %p156 = pnand %p154, %p155
      %p157 = pneg %p156
      // Predicated region
      $region29: #{tpu_custom_call.1} parent=5 // pred_check
        _
      $region30: #{tpu_custom_call.1} parent=5 // pred_check_branch
        %159 = sbr.rel (%p156) target = $region32
      $region31: #{tpu_custom_call.1} parent=5 // pred_region
        %s160 = ssub.s32 %s15, 1
        %s161 = sand.u32 %s28, 1
        %s162 = scalar_lea.sflag [#allocation3], %s161
        %s163 = sand.u32 %s28, 1
        %s164 = smul.addr %s163, 8
        %s165 = scalar_lea.vmem [#allocation2], %s164
        // Predicated region
        $region33: #{tpu_custom_call.1} parent=31 // pred_check
          %p166 = pneg %p41
        $region34: #{tpu_custom_call.1} parent=31 // pred_check_branch
          %168 = sbr.rel (%p166) target = $region36
        $region35: #{tpu_custom_call.1} parent=31 // pred_region
          %170 = dma.done %s162, 128
        $region36: #{tpu_custom_call.1} parent=31 // pred_fallthru
          _
        %s171 = sand.u32 %s28, 1
        %s172 = scalar_lea.sflag [#allocation3], %s171
        %s173 = sand.u32 %s28, 1
        %s174 = smul.addr %s173, 8
        %s175 = scalar_lea.vmem [#allocation2], %s174
        %p176 = pneg %p41
        %p177 = pneg %p38
        %p178 = pneg %p62
        %p179 = pneg %p59
        %p180 = pneg %p83
        %p181 = pneg %p80
        %p182 = pneg %p109
        %p183 = pneg %p106
        %s184 = sand.u32 %s96, 1
        %s185 = scalar_lea.sflag [#allocation4], %s184
        %s186 = sand.u32 %s96, 1
        %s187 = smul.addr %s186, 8
        %s188 = scalar_lea.vmem [#allocation5], %s187
        %v189 = vld [vmem:[%s165] sm:$0xff]
        %v190 = vmul.f32 %v189, %v189
        %192 = vst [vmem:[#allocation1] ss:$2 sm:$0xff] %v190
        %v193 = vld.sshfl [vmem:[#allocation1] sm:$0xff pattern:$0x75316420]
        %v194 = vld.sshfl [vmem:[#allocation1 + $0x8] sm:$0xff pattern:$0x75316420]
        %vm197 = vcmask 1043456
        %v198 = vsel %vm197, %v193, 0.0
        %v199 = vsel %vm197, %v194, 0.0
        %v200 = vadd.f32 %v198, %v199
        %201 = vadd.xlane.f32.xlu0 %v200
        %v202 = vpop.xlane.xlu0 %201
        %v203 = vrsqrt.pop %v202
        %v204 = vmul.f32 %v203, %v202
        %v205 = vmul.f32 %v204, %v203
        %v206 = vmul.f32 0.5, %v205
        %v207 = vsub.f32 1.5, %v206
        %v208 = vmul.f32 %v203, %v207
        %v209 = vmul.f32 %v202, %v208
        %vm210 = vcmp.eq.f32.partialorder %v202, inf
        %v211 = vsel %vm210, %v202, %v209
        %vm212 = vcmp.eq.f32.partialorder %v202, 0.0
        %v213 = vand.u32 %v202, 2147483648
        %v214 = vsel %vm212, %v213, %v211
        %v215 = vsel %vm197, %v214, 0.0
        %v216 = vrot.slane %v215, 4
        %v217 = vadd.f32 %v215, %v216
        %v218 = vrot.slane %v217, 2
        %v219 = vadd.f32 %v217, %v218
        %v220 = vrot.slane %v219, 1
        %v221 = vadd.f32 %v219, %v220
        %v222 = vmul.f32 %v221, 0.25
        %v223 = vld [vmem:[%s1] sm:$0xf]
        %v224 = vadd.f32 %v222, 1e-06
        %v225 = vrcp.pop %v224
        %v226 = vmul.f32 %v224, %v225
        %v227 = vsub.f32 1.0, %v226
        %v228 = vmul.f32 %v225, %v227
        %v229 = vadd.f32 %v225, %v228
        %vm230 = vweird.f32 %v224
        %vm231 = vweird.f32 %v225
        %vm232 = vmor %vm230, %vm231
        %v233 = vsel %vm232, %v225, %v229
        %v234 = vand.u32 2147483647, %v224
        %vm235 = vcmp.eq.f32.partialorder %v234, 8.507059e+37
        %v236 = vand.u32 %v224, 2147483648
        %v237 = vor.u32 1.1754944e-38, %v236
        %v238 = vsel %vm235, %v237, %v233
        %v239 = vmul.f32 %v214, %v238
        %v240 = vmul.f32 %v223, %v239
        %v241 = vadd.f32 %v240, 1.0
        %v242 = vld [vmem:[%s2] sm:$0xf]
        %244 = vset.pattern.permute.xlu0 0
        %245 = vperm.xlu0 %244, %v241
        %v246 = vpop.permute.xlu0 %245
        %v248 = vunpack.c.l.s4 839922192
        %v249 = vunpack.c.0.s8 %v248
        %v250 = vperm.slane %v246, %v249
        %v252 = vmul.f32 %v189, %v250
        %254 = vset.pattern.permute.xlu0 0
        %255 = vperm.xlu0 %254, %v242
        %v256 = vpop.permute.xlu0 %255
        %v258 = vunpack.c.l.s4 839922192
        %v259 = vunpack.c.0.s8 %v258
        %v260 = vperm.slane %v256, %v259
        %v262 = vadd.f32 %v252, %v260
        %263 = vst [vmem:[%s188] sm:$0xff] %v262
        %s264 = sand.u32 %s96, 1
        %s265 = scalar_lea.sflag [#allocation4], %s264
        %s266 = sand.u32 %s96, 1
        %s267 = smul.addr %s266, 8
        %s268 = scalar_lea.vmem [#allocation5], %s267
        // Predicated region
        $region37: #{tpu_custom_call.1} parent=31 // pred_check
          %p269 = pneg %p106
        $region38: #{tpu_custom_call.1} parent=31 // pred_check_branch
          %271 = sbr.rel (%p269) target = $region40
        $region39: #{tpu_custom_call.1} parent=31 // pred_region
          %273 = vsyncadd %s265, 0
          %s274 = smul.addr %s20, 2
          %s275 = smul.addr %s274, 4
          %s276 = scalar_lea.hbm %s3, %s275
          %s278 = sshll.u32 %s268, 4
          %s279 = int_to_ptr.vmem [resolvable:$true] %s278
          %s280 = sshll.u32 %s276, 4
          %s281 = int_to_ptr.hbm [resolvable:$true] %s280
          %283 = dma.vmem_to_hbm [thread:$0]  %s279, 128, %s281, %s265
        $region40: #{tpu_custom_call.1} parent=31 // pred_fallthru
          _
      $region32: #{tpu_custom_call.1} parent=5 // pred_fallthru
        _
      %p284 = scmp.le.s32.totalorder 2, %s15
      // Predicated region
      $region41: #{tpu_custom_call.1} parent=5 // pred_check
        %p285 = pneg %p284
      $region42: #{tpu_custom_call.1} parent=5 // pred_check_branch
        %287 = sbr.rel (%p285) target = $region44
      $region43: #{tpu_custom_call.1} parent=5 // pred_region
        %s288 = ssub.s32 %s15, 2
        // Predicated region
        $region45: #{tpu_custom_call.1} parent=43 // pred_check
          %p289 = pneg %p112
        $region46: #{tpu_custom_call.1} parent=43 // pred_check_branch
          %291 = sbr.rel (%p289) target = $region48
        $region47: #{tpu_custom_call.1} parent=43 // pred_region
          %s292 = sand.u32 %s97, 1
          %s293 = scalar_lea.sflag [#allocation4], %s292
          %s294 = sand.u32 %s97, 1
          %s295 = smul.addr %s294, 8
          %s296 = scalar_lea.vmem [#allocation5], %s295
          %298 = dma.done %s293, 128
        $region48: #{tpu_custom_call.1} parent=43 // pred_fallthru
          _
      $region44: #{tpu_custom_call.1} parent=5 // pred_fallthru
        _
    $region6: #{tpu_custom_call.1} parent=1 // loop_footer
      %s19 = sadd.s32 1, %s15
    $region7: #{tpu_custom_call.1} parent=1 // loop_footer_branch
      %14 = sbr.rel target = $region3
    $region8: #{tpu_custom_call.1} parent=1 // loop_exit
      _
    %299 = vsyncpa [#allocation3], 1
    %s300 = scalar_lea.sflag [#allocation3], 1
    %301 = vsyncpa %s300, 1
    %302 = vsyncpa [#allocation4], 1
    %s303 = scalar_lea.sflag [#allocation4], 1
    %304 = vsyncpa %s303, 1

</llo_original>
